<compile_context>
chip_gen: v6e
topology: v6e:2x2x1
jax: 0.10.0
libtpu: 0.0.40
codegen_flags: <defaults>
</compile_context>

<pallas_src>
import functools

import jax
import jax.numpy as jnp
from jax.experimental import pallas as pl
from jax.experimental.pallas import tpu as pltpu


def _round_up(n: int, m: int) -> int:
    return ((n + m - 1) // m) * m


def _make_actor_kernel(max_action: float):
    def actor_kernel(x_ref, w1_ref, b1_ref, w2_ref, b2_ref, w3_ref, b3_ref, out_ref):
        # x_ref: [input_size, TB]  (features on sublanes, batch tile on lanes)
        x = x_ref[...]
        # Layer 1: [h1, in] @ [in, TB] -> [h1, TB]
        h = jnp.tanh(
            jnp.dot(w1_ref[...], x, preferred_element_type=jnp.float32) + b1_ref[...]
        )
        # Layer 2: [h2, h1] @ [h1, TB] -> [h2, TB]
        h = jnp.tanh(
            jnp.dot(w2_ref[...], h, preferred_element_type=jnp.float32) + b2_ref[...]
        )
        # Output layer: [act, h2] @ [h2, TB] -> [act, TB], tanh output activation
        a = jnp.tanh(
            jnp.dot(w3_ref[...], h, preferred_element_type=jnp.float32) + b3_ref[...]
        )
        # max_action scale on the VPU (free filler next to the EUP tanh work).
        out_ref[...] = (max_action * a).astype(out_ref.dtype)

    return actor_kernel


@functools.partial(jax.jit, static_argnames=("max_action", "block_batch"))
def lyapunov_actor_forward(x, params, max_action=1.0, block_batch=256):
    """Fused MLP forward.

    x:      [batch, input_size] float32
    params: dict with PyTorch-layout weights/biases:
            w1 [h1, in], b1 [h1, 1], w2 [h2, h1], b2 [h2, 1],
            w3 [action_dim, h2], b3 [action_dim, 1]
    """
    batch, input_size = x.shape
    action_dim = params["w3"].shape[0]

    # Batch tile: multiple of 128 (lane width); don't over-pad tiny batches.
    tb = min(int(block_batch), _round_up(batch, 128))
    tb = _round_up(tb, 128)
    padded_batch = _round_up(batch, tb)
    num_tiles = padded_batch // tb

    # Feature-major input slab: [input_size, padded_batch], zero-padded rows.
    x_t = jnp.transpose(x)  # [input_size, batch]
    if padded_batch != batch:
        x_t = jnp.pad(x_t, ((0, 0), (0, padded_batch - batch)))

    # Weights/biases: whole-array blocks, constant index_map -> VMEM-resident.
    const_spec = lambda a: pl.BlockSpec(a.shape, lambda i: (0,) * a.ndim)

    kernel = _make_actor_kernel(float(max_action))
    out_t = pl.pallas_call(
        kernel,
        out_shape=jax.ShapeDtypeStruct((action_dim, padded_batch), jnp.float32),
        grid=(num_tiles,),
        in_specs=[
            pl.BlockSpec((input_size, tb), lambda i: (0, i)),  # x tile marches with grid
            const_spec(params["w1"]),
            const_spec(params["b1"]),
            const_spec(params["w2"]),
            const_spec(params["b2"]),
            const_spec(params["w3"]),
            const_spec(params["b3"]),
        ],
        out_specs=pl.BlockSpec((action_dim, tb), lambda i: (0, i)),  # lane-dense output
        compiler_params=pltpu.CompilerParams(
            dimension_semantics=("parallel",),  # v7x: 2 TCs split the batch tiles
        ),
    )(
        x_t,
        params["w1"], params["b1"],
        params["w2"], params["b2"],
        params["w3"], params["b3"],
    )

    # Back to batch-major [batch, action_dim]; drop batch padding.
    return jnp.transpose(out_t)[:batch]


def init_params(key, input_size, hidden_sizes=(5, 5), action_dim=1):
    """PyTorch-style uniform(-1/sqrt(fan_in), 1/sqrt(fan_in)) init.

    Weights in PyTorch [out, in] layout, biases as [out, 1].
    """
    sizes = (input_size,) + tuple(hidden_sizes) + (action_dim,)
    params = {}
    for i, (fan_in, fan_out) in enumerate(zip(sizes[:-1], sizes[1:]), start=1):
        key, kw, kb = jax.random.split(key, 3)
        bound = 1.0 / jnp.sqrt(float(fan_in))
        params[f"w{i}"] = jax.random.uniform(
            kw, (fan_out, fan_in), jnp.float32, minval=-bound, maxval=bound
        )
        params[f"b{i}"] = jax.random.uniform(
            kb, (fan_out, 1), jnp.float32, minval=-bound, maxval=bound
        )
    return params


def reference_forward(x, params, max_action=1.0):
    h1 = jnp.tanh(x @ params["w1"].T + params["b1"].T)
    h2 = jnp.tanh(h1 @ params["w2"].T + params["b2"].T)
    a = jnp.tanh(h2 @ params["w3"].T + params["b3"].T)
    return max_action * a


if __name__ == "__main__":
    key = jax.random.PRNGKey(0)

    input_size = 8
    hidden_sizes = (5, 5)
    action_dim = 1
    max_action = 1.0

    params = init_params(key, input_size, hidden_sizes, action_dim)

    # Small case (matches the module's toy sizes): single grid tile.
    key, kx = jax.random.split(key)
    x_small = jax.random.normal(kx, (4, input_size), jnp.float32)
    out_small = jax.block_until_ready(
        lyapunov_actor_forward(x_small, params, max_action)
    )
    ref_small = reference_forward(x_small, params, max_action)
    assert out_small.shape == (4, action_dim)
    assert jnp.allclose(out_small, ref_small, atol=1e-5, rtol=1e-5)

    # Larger, non-multiple batch: exercises batch padding + multi-tile grid.
    key, kx2 = jax.random.split(key)
    x_big = jax.random.normal(kx2, (300, input_size), jnp.float32)
    out_big = jax.block_until_ready(
        lyapunov_actor_forward(x_big, params, max_action, block_batch=128)
    )
    ref_big = reference_forward(x_big, params, max_action)
    assert out_big.shape == (300, action_dim)
    assert jnp.allclose(out_big, ref_big, atol=1e-5, rtol=1e-5)

    print("KERNEL_OK")
</pallas_src>

<mosaic_0001>
module attributes {stable_mosaic.version = 11 : i64} {
  func.func @actor_kernel(%arg0: i32, %arg1: memref<8x128xf32, #tpu.memory_space<vmem>>, %arg2: memref<5x8xf32, #tpu.memory_space<vmem>>, %arg3: memref<5x1xf32, #tpu.memory_space<vmem>>, %arg4: memref<5x5xf32, #tpu.memory_space<vmem>>, %arg5: memref<5x1xf32, #tpu.memory_space<vmem>>, %arg6: memref<1x5xf32, #tpu.memory_space<vmem>>, %arg7: memref<1x1xf32, #tpu.memory_space<vmem>>, %arg8: memref<1x128xf32, #tpu.memory_space<vmem>>) attributes {dimension_semantics = [#tpu.dimension_semantics<parallel>], iteration_bounds = array<i64: 1>, scalar_prefetch = 0 : i64, scratch_operands = 0 : i64, tpu.core_type = #tpu.core_type<tc>, window_params = [{transform_indices = @transform_0, window_bounds = array<i64: 8, 128>}, {pipeline_mode = #tpu.pipeline_mode<synchronous>, transform_indices = @transform_1, window_bounds = array<i64: 5, 8>}, {pipeline_mode = #tpu.pipeline_mode<synchronous>, transform_indices = @transform_2, window_bounds = array<i64: 5, 1>}, {pipeline_mode = #tpu.pipeline_mode<synchronous>, transform_indices = @transform_3, window_bounds = array<i64: 5, 5>}, {pipeline_mode = #tpu.pipeline_mode<synchronous>, transform_indices = @transform_4, window_bounds = array<i64: 5, 1>}, {pipeline_mode = #tpu.pipeline_mode<synchronous>, transform_indices = @transform_5, window_bounds = array<i64: 1, 5>}, {pipeline_mode = #tpu.pipeline_mode<synchronous>, transform_indices = @transform_6, window_bounds = array<i64: 1, 1>}, {transform_indices = @transform_7, window_bounds = array<i64: 1, 128>}]} {
    %c0 = arith.constant 0 : index
    %c0_0 = arith.constant 0 : index
    %0 = vector.load %arg1[%c0, %c0_0] : memref<8x128xf32, #tpu.memory_space<vmem>>, vector<8x128xf32>
    %c0_1 = arith.constant 0 : index
    %c0_2 = arith.constant 0 : index
    %1 = vector.load %arg2[%c0_1, %c0_2] : memref<5x8xf32, #tpu.memory_space<vmem>>, vector<5x8xf32>
    %cst = arith.constant dense<0.000000e+00> : vector<5x128xf32>
    %2 = tpu.matmul %1, %0, %cst {dimension_numbers = #tpu.dot_dimension_numbers<[1], [0], [0], [1], [0, 0, 1, 1], [], []>} : vector<5x8xf32>, vector<8x128xf32>, vector<5x128xf32> -> vector<5x128xf32>
    %c0_3 = arith.constant 0 : index
    %c0_4 = arith.constant 0 : index
    %3 = vector.load %arg3[%c0_3, %c0_4] : memref<5x1xf32, #tpu.memory_space<vmem>>, vector<5x1xf32>
    %4 = vector.broadcast %3 : vector<5x1xf32> to vector<5x128xf32>
    %5 = arith.addf %2, %4 : vector<5x128xf32>
    %6 = math.tanh %5 : vector<5x128xf32>
    %c0_5 = arith.constant 0 : index
    %c0_6 = arith.constant 0 : index
    %7 = vector.load %arg4[%c0_5, %c0_6] : memref<5x5xf32, #tpu.memory_space<vmem>>, vector<5x5xf32>
    %cst_7 = arith.constant dense<0.000000e+00> : vector<5x128xf32>
    %8 = tpu.matmul %7, %6, %cst_7 {dimension_numbers = #tpu.dot_dimension_numbers<[1], [0], [0], [1], [0, 0, 1, 1], [], []>} : vector<5x5xf32>, vector<5x128xf32>, vector<5x128xf32> -> vector<5x128xf32>
    %c0_8 = arith.constant 0 : index
    %c0_9 = arith.constant 0 : index
    %9 = vector.load %arg5[%c0_8, %c0_9] : memref<5x1xf32, #tpu.memory_space<vmem>>, vector<5x1xf32>
    %10 = vector.broadcast %9 : vector<5x1xf32> to vector<5x128xf32>
    %11 = arith.addf %8, %10 : vector<5x128xf32>
    %12 = math.tanh %11 : vector<5x128xf32>
    %c0_10 = arith.constant 0 : index
    %c0_11 = arith.constant 0 : index
    %13 = vector.load %arg6[%c0_10, %c0_11] : memref<1x5xf32, #tpu.memory_space<vmem>>, vector<1x5xf32>
    %cst_12 = arith.constant dense<0.000000e+00> : vector<1x128xf32>
    %14 = tpu.matmul %13, %12, %cst_12 {dimension_numbers = #tpu.dot_dimension_numbers<[1], [0], [0], [1], [0, 0, 1, 1], [], []>} : vector<1x5xf32>, vector<5x128xf32>, vector<1x128xf32> -> vector<1x128xf32>
    %c0_13 = arith.constant 0 : index
    %c0_14 = arith.constant 0 : index
    %15 = vector.load %arg7[%c0_13, %c0_14] : memref<1x1xf32, #tpu.memory_space<vmem>>, vector<1x1xf32>
    %16 = vector.broadcast %15 : vector<1x1xf32> to vector<1x128xf32>
    %17 = arith.addf %14, %16 : vector<1x128xf32>
    %18 = math.tanh %17 : vector<1x128xf32>
    %cst_15 = arith.constant 1.000000e+00 : f32
    %19 = vector.broadcast %cst_15 : f32 to vector<1x128xf32>
    %20 = arith.mulf %19, %18 : vector<1x128xf32>
    %c0_16 = arith.constant 0 : index
    %c0_17 = arith.constant 0 : index
    %21 = vector.load %arg8[%c0_16, %c0_17] : memref<1x128xf32, #tpu.memory_space<vmem>>, vector<1x128xf32>
    tpu.vector_store %arg8[%c0_16, %c0_17], %20 {strides = array<i32>} : memref<1x128xf32, #tpu.memory_space<vmem>>, vector<1x128xf32>,
    return
  }
  func.func @transform_0(%arg0: i32) -> (i32, i32) {
    %c0_i32 = arith.constant 0 : i32
    %c0_i32_0 = arith.constant 0 : i32
    return %c0_i32, %arg0 : i32, i32
  }
  func.func @transform_1(%arg0: i32) -> (i32, i32) {
    %c0_i32 = arith.constant 0 : i32
    %c0_i32_0 = arith.constant 0 : i32
    %c0_i32_1 = arith.constant 0 : i32
    return %c0_i32, %c0_i32_0 : i32, i32
  }
  func.func @transform_2(%arg0: i32) -> (i32, i32) {
    %c0_i32 = arith.constant 0 : i32
    %c0_i32_0 = arith.constant 0 : i32
    %c0_i32_1 = arith.constant 0 : i32
    return %c0_i32, %c0_i32_0 : i32, i32
  }
  func.func @transform_3(%arg0: i32) -> (i32, i32) {
    %c0_i32 = arith.constant 0 : i32
    %c0_i32_0 = arith.constant 0 : i32
    %c0_i32_1 = arith.constant 0 : i32
    return %c0_i32, %c0_i32_0 : i32, i32
  }
  func.func @transform_4(%arg0: i32) -> (i32, i32) {
    %c0_i32 = arith.constant 0 : i32
    %c0_i32_0 = arith.constant 0 : i32
    %c0_i32_1 = arith.constant 0 : i32
    return %c0_i32, %c0_i32_0 : i32, i32
  }
  func.func @transform_5(%arg0: i32) -> (i32, i32) {
    %c0_i32 = arith.constant 0 : i32
    %c0_i32_0 = arith.constant 0 : i32
    %c0_i32_1 = arith.constant 0 : i32
    return %c0_i32, %c0_i32_0 : i32, i32
  }
  func.func @transform_6(%arg0: i32) -> (i32, i32) {
    %c0_i32 = arith.constant 0 : i32
    %c0_i32_0 = arith.constant 0 : i32
    %c0_i32_1 = arith.constant 0 : i32
    return %c0_i32, %c0_i32_0 : i32, i32
  }
  func.func @transform_7(%arg0: i32) -> (i32, i32) {
    %c0_i32 = arith.constant 0 : i32
    %c0_i32_0 = arith.constant 0 : i32
    return %c0_i32, %arg0 : i32, i32
  }
}

</mosaic_0001>

<llo_original>
// kernel: lyapunov_actor_forward.1
$region0: #{lyapunov_actor_forward.1}
  #allocation0 [shape = 'u32[]', space=smem, size = 0x4, offset = 0x4, fixed_abs, tag = 'smem constant byte address 0x4 - core index']
  #allocation1 [shape = 'u32[144,128]{1,0:T(1,128)}', space=vmem, size = 0x12000, scoped, tag = 'internal scratch']
  #allocation2 [shape = 'f32[1,1]{1,0:T(1,128)S(1)}', space=vmem, size = 0x200, scoped, tag = 'scoped memory for lyapunov_actor_forward.1']
  %s0 = inlined_call_operand.vmem [shape: f32[8,128], index: 0, kind: input, shape index: {}]
  %s1 = inlined_call_operand.vmem [shape: f32[5,8], index: 1, kind: input, shape index: {}]
  %s2 = inlined_call_operand.vmem [shape: f32[5,1], index: 2, kind: input, shape index: {}]
  %s3 = inlined_call_operand.vmem [shape: f32[5,5], index: 3, kind: input, shape index: {}]
  %s4 = inlined_call_operand.vmem [shape: f32[5,1], index: 4, kind: input, shape index: {}]
  %s5 = inlined_call_operand.vmem [shape: f32[1,5], index: 5, kind: input, shape index: {}]
  %s6 = inlined_call_operand.<no memory space> [shape: f32[1,1], index: 6, kind: input, shape index: {}]
  %s7 = inlined_call_operand.vmem [shape: f32[1,128], index: 7, kind: output, shape index: {}]
  %s8 = sld [smem:[#allocation0]]
  $region38: #{lyapunov_actor_forward.1} parent=0
    _
  %s10 = ssub.s32 1, %s8
  %s11 = scalar_select 0, %s10, %s8
  %v12 = vstv %s6
  %13 = vst [vmem:[#allocation2] sm:$0x1] %v12
  // Predicated region
  $region2: #{lyapunov_actor_forward.1} parent=0 // pred_check
    _
  $region3: #{lyapunov_actor_forward.1} parent=0 // pred_check_branch
    %15 = sbr.rel (0) target = $region5
  $region4: #{lyapunov_actor_forward.1} parent=0 // pred_region
    _
  $region5: #{lyapunov_actor_forward.1} parent=0 // pred_fallthru
    _
  // Predicated region
  $region6: #{lyapunov_actor_forward.1} parent=0 // pred_check
    _
  $region7: #{lyapunov_actor_forward.1} parent=0 // pred_check_branch
    %17 = sbr.rel (0) target = $region9
  $region8: #{lyapunov_actor_forward.1} parent=0 // pred_region
    _
  $region9: #{lyapunov_actor_forward.1} parent=0 // pred_fallthru
    _
  // Predicated region
  $region10: #{lyapunov_actor_forward.1} parent=0 // pred_check
    _
  $region11: #{lyapunov_actor_forward.1} parent=0 // pred_check_branch
    %19 = sbr.rel (0) target = $region13
  $region12: #{lyapunov_actor_forward.1} parent=0 // pred_region
    _
  $region13: #{lyapunov_actor_forward.1} parent=0 // pred_fallthru
    _
  // Predicated region
  $region14: #{lyapunov_actor_forward.1} parent=0 // pred_check
    _
  $region15: #{lyapunov_actor_forward.1} parent=0 // pred_check_branch
    %21 = sbr.rel (0) target = $region17
  $region16: #{lyapunov_actor_forward.1} parent=0 // pred_region
    _
  $region17: #{lyapunov_actor_forward.1} parent=0 // pred_fallthru
    _
  // Predicated region
  $region18: #{lyapunov_actor_forward.1} parent=0 // pred_check
    _
  $region19: #{lyapunov_actor_forward.1} parent=0 // pred_check_branch
    %23 = sbr.rel (0) target = $region21
  $region20: #{lyapunov_actor_forward.1} parent=0 // pred_region
    _
  $region21: #{lyapunov_actor_forward.1} parent=0 // pred_fallthru
    _
  // Predicated region
  $region22: #{lyapunov_actor_forward.1} parent=0 // pred_check
    _
  $region23: #{lyapunov_actor_forward.1} parent=0 // pred_check_branch
    %25 = sbr.rel (0) target = $region25
  $region24: #{lyapunov_actor_forward.1} parent=0 // pred_region
    _
  $region25: #{lyapunov_actor_forward.1} parent=0 // pred_fallthru
    _
  // Predicated region
  $region26: #{lyapunov_actor_forward.1} parent=0 // pred_check
    _
  $region27: #{lyapunov_actor_forward.1} parent=0 // pred_check_branch
    %27 = sbr.rel (0) target = $region29
  $region28: #{lyapunov_actor_forward.1} parent=0 // pred_region
    _
  $region29: #{lyapunov_actor_forward.1} parent=0 // pred_fallthru
    _
  %v28 = vld [vmem:[%s0] sm:$0xff]
  %v29 = vld [vmem:[%s1] sm:$0x1f]
  %v30 = vld [vmem:[%s2] sm:$0x1f]
  %32 = vset.pattern.permute.xlu0 0
  %33 = vperm.xlu0 %32, %v30
  %v34 = vpop.permute.xlu0 %33
  %vm36 = vcmask 64512
  %v38 = vsel %vm36, %v29, 0
  %40 = vmatprep.subr.mxu0 0.0
  %41 = vmatpush1.msra.mxu0 0.0
  %42 = vmatprep.subr.mxu0 0.0
  %43 = vmatpush1.msra.mxu0 0.0
  %44 = vmatprep.subr.mxu0 0.0
  %45 = vmatpush1.msra.mxu0 0.0
  %46 = vmatprep.subr.mxu0 0.0
  %47 = vmatpush1.msra.mxu0 0.0
  %48 = vmatprep.subr.mxu0 0.0
  %49 = vmatpush1.msra.mxu0 0.0
  %50 = vmatprep.subr.mxu0 0.0
  %51 = vmatpush1.msra.mxu0 0.0
  %52 = vmatprep.subr.mxu0 0.0
  %53 = vmatpush1.msra.mxu0 0.0
  %54 = vmatprep.subr.mxu0 0.0
  %55 = vmatpush1.msra.mxu0 0.0
  %56 = vmatprep.subr.mxu0 0.0
  %57 = vmatpush1.msra.mxu0 0.0
  %58 = vmatprep.subr.mxu0 0.0
  %59 = vmatpush1.msra.mxu0 0.0
  %60 = vmatprep.subr.mxu0 0.0
  %61 = vmatpush1.msra.mxu0 0.0
  %62 = vmatprep.subr.mxu0 0.0
  %63 = vmatpush1.msra.mxu0 0.0
  %64 = vmatprep.subr.mxu0 0.0
  %65 = vmatpush1.msra.mxu0 0.0
  %66 = vmatprep.subr.mxu0 0.0
  %67 = vmatpush1.msra.mxu0 0.0
  %68 = vmatprep.subr.mxu0 0.0
  %69 = vmatpush1.msra.mxu0 0.0
  %70 = vmatprep.subr.mxu0 0.0
  %71 = vmatpush1.msra.mxu0 %v28
  %72 = vmatprep.subr.mxu0 0.0
  %73 = vmatpush2.msra.mxu0 0.0
  %74 = vmatprep.subr.mxu0 0.0
  %75 = vmatpush2.msra.mxu0 0.0
  %76 = vmatprep.subr.mxu0 0.0
  %77 = vmatpush2.msra.mxu0 0.0
  %78 = vmatprep.subr.mxu0 0.0
  %79 = vmatpush2.msra.mxu0 0.0
  %80 = vmatprep.subr.mxu0 0.0
  %81 = vmatpush2.msra.mxu0 0.0
  %82 = vmatprep.subr.mxu0 0.0
  %83 = vmatpush2.msra.mxu0 0.0
  %84 = vmatprep.subr.mxu0 0.0
  %85 = vmatpush2.msra.mxu0 0.0
  %86 = vmatprep.subr.mxu0 0.0
  %87 = vmatpush2.msra.mxu0 0.0
  %88 = vmatprep.subr.mxu0 0.0
  %89 = vmatpush2.msra.mxu0 0.0
  %90 = vmatprep.subr.mxu0 0.0
  %91 = vmatpush2.msra.mxu0 0.0
  %92 = vmatprep.subr.mxu0 0.0
  %93 = vmatpush2.msra.mxu0 0.0
  %94 = vmatprep.subr.mxu0 0.0
  %95 = vmatpush2.msra.mxu0 0.0
  %96 = vmatprep.subr.mxu0 0.0
  %97 = vmatpush2.msra.mxu0 0.0
  %98 = vmatprep.subr.mxu0 0.0
  %99 = vmatpush2.msra.mxu0 0.0
  %100 = vmatprep.subr.mxu0 0.0
  %101 = vmatpush2.msra.mxu0 0.0
  %102 = vmatprep.subr.mxu0 0.0
  %103 = vmatpush2.msra.mxu0 0.0
  %104 = vmatprep.mubr.f32.mxu0 0.0
  %105 = vmatmul.mubr.f32.gmra.mxu0 %v38
  %v106 = vpop.f32.mrf.mxu0
  %v107 = vadd.f32 %v34, %v106
  %v108 = vpop.f32.mrf.mxu0
  %109 = vdwg.mxu0
  %v110 = vtanh.pop %v107
  %v111 = vld [vmem:[%s3] sm:$0x1f]
  %v112 = vld [vmem:[%s4] sm:$0x1f]
  %114 = vset.pattern.permute.xlu0 0
  %115 = vperm.xlu0 %114, %v112
  %v116 = vpop.permute.xlu0 %115
  %vm118 = vcmask 39936
  %v120 = vsel %vm118, %v111, 0
  %vm122 = vcmask 1044480
  %v124 = vsel %vm122, %v110, 0
  %126 = vmatprep.subr.mxu0 0.0
  %127 = vmatpush1.msra.mxu0 0.0
  %128 = vmatprep.subr.mxu0 0.0
  %129 = vmatpush1.msra.mxu0 0.0
  %130 = vmatprep.subr.mxu0 0.0
  %131 = vmatpush1.msra.mxu0 0.0
  %132 = vmatprep.subr.mxu0 0.0
  %133 = vmatpush1.msra.mxu0 0.0
  %134 = vmatprep.subr.mxu0 0.0
  %135 = vmatpush1.msra.mxu0 0.0
  %136 = vmatprep.subr.mxu0 0.0
  %137 = vmatpush1.msra.mxu0 0.0
  %138 = vmatprep.subr.mxu0 0.0
  %139 = vmatpush1.msra.mxu0 0.0
  %140 = vmatprep.subr.mxu0 0.0
  %141 = vmatpush1.msra.mxu0 0.0
  %142 = vmatprep.subr.mxu0 0.0
  %143 = vmatpush1.msra.mxu0 0.0
  %144 = vmatprep.subr.mxu0 0.0
  %145 = vmatpush1.msra.mxu0 0.0
  %146 = vmatprep.subr.mxu0 0.0
  %147 = vmatpush1.msra.mxu0 0.0
  %148 = vmatprep.subr.mxu0 0.0
  %149 = vmatpush1.msra.mxu0 0.0
  %150 = vmatprep.subr.mxu0 0.0
  %151 = vmatpush1.msra.mxu0 0.0
  %152 = vmatprep.subr.mxu0 0.0
  %153 = vmatpush1.msra.mxu0 0.0
  %154 = vmatprep.subr.mxu0 0.0
  %155 = vmatpush1.msra.mxu0 0.0
  %156 = vmatprep.subr.mxu0 0.0
  %157 = vmatpush1.msra.mxu0 %v124
  %158 = vmatprep.subr.mxu0 0.0
  %159 = vmatpush2.msra.mxu0 0.0
  %160 = vmatprep.subr.mxu0 0.0
  %161 = vmatpush2.msra.mxu0 0.0
  %162 = vmatprep.subr.mxu0 0.0
  %163 = vmatpush2.msra.mxu0 0.0
  %164 = vmatprep.subr.mxu0 0.0
  %165 = vmatpush2.msra.mxu0 0.0
  %166 = vmatprep.subr.mxu0 0.0
  %167 = vmatpush2.msra.mxu0 0.0
  %168 = vmatprep.subr.mxu0 0.0
  %169 = vmatpush2.msra.mxu0 0.0
  %170 = vmatprep.subr.mxu0 0.0
  %171 = vmatpush2.msra.mxu0 0.0
  %172 = vmatprep.subr.mxu0 0.0
  %173 = vmatpush2.msra.mxu0 0.0
  %174 = vmatprep.subr.mxu0 0.0
  %175 = vmatpush2.msra.mxu0 0.0
  %176 = vmatprep.subr.mxu0 0.0
  %177 = vmatpush2.msra.mxu0 0.0
  %178 = vmatprep.subr.mxu0 0.0
  %179 = vmatpush2.msra.mxu0 0.0
  %180 = vmatprep.subr.mxu0 0.0
  %181 = vmatpush2.msra.mxu0 0.0
  %182 = vmatprep.subr.mxu0 0.0
  %183 = vmatpush2.msra.mxu0 0.0
  %184 = vmatprep.subr.mxu0 0.0
  %185 = vmatpush2.msra.mxu0 0.0
  %186 = vmatprep.subr.mxu0 0.0
  %187 = vmatpush2.msra.mxu0 0.0
  %188 = vmatprep.subr.mxu0 0.0
  %189 = vmatpush2.msra.mxu0 0.0
  %190 = vmatprep.mubr.f32.mxu0 0.0
  %191 = vmatmul.mubr.f32.gmra.mxu0 %v120
  %v192 = vpop.f32.mrf.mxu0
  %v193 = vadd.f32 %v116, %v192
  %v194 = vpop.f32.mrf.mxu0
  %195 = vdwg.mxu0
  %v196 = vtanh.pop %v193
  %v197 = vld [vmem:[%s5] sm:$0x1]
  %v198 = vld [vmem:[#allocation2] sm:$0x1]
  %200 = vset.pattern.permute.xlu0 0
  %201 = vperm.xlu0 %200, %v198
  %v202 = vpop.permute.xlu0 %201
  %v204 = vlaneseq
  %v205 = vshrl.u32 %v204, 7
  %v206 = vsub.s32 0, %v205
  %v207 = vrot.slane %v202, %v206
  %v209 = vsel %vm118, %v197, 0
  %v212 = vsel %vm122, %v196, 0
  %214 = vmatprep.subr.mxu0 0.0
  %215 = vmatpush1.msra.mxu0 0.0
  %216 = vmatprep.subr.mxu0 0.0
  %217 = vmatpush1.msra.mxu0 0.0
  %218 = vmatprep.subr.mxu0 0.0
  %219 = vmatpush1.msra.mxu0 0.0
  %220 = vmatprep.subr.mxu0 0.0
  %221 = vmatpush1.msra.mxu0 0.0
  %222 = vmatprep.subr.mxu0 0.0
  %223 = vmatpush1.msra.mxu0 0.0
  %224 = vmatprep.subr.mxu0 0.0
  %225 = vmatpush1.msra.mxu0 0.0
  %226 = vmatprep.subr.mxu0 0.0
  %227 = vmatpush1.msra.mxu0 0.0
  %228 = vmatprep.subr.mxu0 0.0
  %229 = vmatpush1.msra.mxu0 0.0
  %230 = vmatprep.subr.mxu0 0.0
  %231 = vmatpush1.msra.mxu0 0.0
  %232 = vmatprep.subr.mxu0 0.0
  %233 = vmatpush1.msra.mxu0 0.0
  %234 = vmatprep.subr.mxu0 0.0
  %235 = vmatpush1.msra.mxu0 0.0
  %236 = vmatprep.subr.mxu0 0.0
  %237 = vmatpush1.msra.mxu0 0.0
  %238 = vmatprep.subr.mxu0 0.0
  %239 = vmatpush1.msra.mxu0 0.0
  %240 = vmatprep.subr.mxu0 0.0
  %241 = vmatpush1.msra.mxu0 0.0
  %242 = vmatprep.subr.mxu0 0.0
  %243 = vmatpush1.msra.mxu0 0.0
  %244 = vmatprep.subr.mxu0 0.0
  %245 = vmatpush1.msra.mxu0 %v212
  %246 = vmatprep.subr.mxu0 0.0
  %247 = vmatpush2.msra.mxu0 0.0
  %248 = vmatprep.subr.mxu0 0.0
  %249 = vmatpush2.msra.mxu0 0.0
  %250 = vmatprep.subr.mxu0 0.0
  %251 = vmatpush2.msra.mxu0 0.0
  %252 = vmatprep.subr.mxu0 0.0
  %253 = vmatpush2.msra.mxu0 0.0
  %254 = vmatprep.subr.mxu0 0.0
  %255 = vmatpush2.msra.mxu0 0.0
  %256 = vmatprep.subr.mxu0 0.0
  %257 = vmatpush2.msra.mxu0 0.0
  %258 = vmatprep.subr.mxu0 0.0
  %259 = vmatpush2.msra.mxu0 0.0
  %260 = vmatprep.subr.mxu0 0.0
  %261 = vmatpush2.msra.mxu0 0.0
  %262 = vmatprep.subr.mxu0 0.0
  %263 = vmatpush2.msra.mxu0 0.0
  %264 = vmatprep.subr.mxu0 0.0
  %265 = vmatpush2.msra.mxu0 0.0
  %266 = vmatprep.subr.mxu0 0.0
  %267 = vmatpush2.msra.mxu0 0.0
  %268 = vmatprep.subr.mxu0 0.0
  %269 = vmatpush2.msra.mxu0 0.0
  %270 = vmatprep.subr.mxu0 0.0
  %271 = vmatpush2.msra.mxu0 0.0
  %272 = vmatprep.subr.mxu0 0.0
  %273 = vmatpush2.msra.mxu0 0.0
  %274 = vmatprep.subr.mxu0 0.0
  %275 = vmatpush2.msra.mxu0 0.0
  %276 = vmatprep.subr.mxu0 0.0
  %277 = vmatpush2.msra.mxu0 0.0
  %278 = vmatprep.mubr.f32.mxu0 0.0
  %279 = vmatmul.mubr.f32.gmra.mxu0 %v209
  %v280 = vpop.f32.mrf.mxu0
  %v281 = vadd.f32 %v207, %v280
  %v282 = vpop.f32.mrf.mxu0
  %283 = vdwg.mxu0
  %v284 = vtanh.pop %v281
  %285 = vst [vmem:[%s7] sm:$0x1] %v284
  // Predicated region
  $region30: #{lyapunov_actor_forward.1} parent=0 // pred_check
    _
  $region31: #{lyapunov_actor_forward.1} parent=0 // pred_check_branch
    %287 = sbr.rel (0) target = $region33
  $region32: #{lyapunov_actor_forward.1} parent=0 // pred_region
    _
  $region33: #{lyapunov_actor_forward.1} parent=0 // pred_fallthru
    _
  // Predicated region
  $region34: #{lyapunov_actor_forward.1} parent=0 // pred_check
    _
  $region35: #{lyapunov_actor_forward.1} parent=0 // pred_check_branch
    %289 = sbr.rel (0) target = $region37
  $region36: #{lyapunov_actor_forward.1} parent=0 // pred_region
    _
  $region37: #{lyapunov_actor_forward.1} parent=0 // pred_fallthru
    _

</llo_original>
